<compile_context>
chip_gen: v7x
topology: tpu7x:2x2x1
jax: 0.10.0
libtpu: 0.0.40
codegen_flags: <defaults>
</compile_context>

<pallas_src>
import jax
import jax.numpy as jnp
from jax.experimental import pallas as pl
from jax.experimental.pallas import tpu as pltpu


# ---------------------------------------------------------------------------
# Model dimensions (small, consistent with a VAE decoder forward)
# ---------------------------------------------------------------------------
B = 2            # batch
LATENT = 8       # latent dim of z
HIDDEN = 32      # hidden width of decoder_net
C, H, W = 4, 16, 16
D_OUT = C * H * W   # 1024


# ---------------------------------------------------------------------------
# Pallas kernel: fused MLP decoder (both matmuls + bias + ReLU)
# ---------------------------------------------------------------------------
def gaussian_decoder_kernel(z_ref, w1_ref, b1_ref, w2_ref, b2_ref, mean_ref):
    # z:  (B, LATENT)       f32
    # w1: (LATENT, HIDDEN)  bf16       b1: (1, HIDDEN) f32
    # w2: (HIDDEN, D_OUT)   bf16       b2: (1, D_OUT)  f32
    # mean: (B, D_OUT)      f32
    z = z_ref[...]
    h = jnp.dot(z.astype(jnp.bfloat16), w1_ref[...],
                preferred_element_type=jnp.float32) + b1_ref[...]
    h = jnp.maximum(h, 0.0)                       # ReLU, f32 on VPU
    mean = jnp.dot(h.astype(jnp.bfloat16), w2_ref[...],
                   preferred_element_type=jnp.float32) + b2_ref[...]
    mean_ref[...] = mean


# ---------------------------------------------------------------------------
# One-time parameter preparation: cast weights to bf16 (biases stay f32)
# ---------------------------------------------------------------------------
def prepare_params(w1, b1, w2, b2):
    return (w1.astype(jnp.bfloat16), b1.astype(jnp.float32),
            w2.astype(jnp.bfloat16), b2.astype(jnp.float32))


# ---------------------------------------------------------------------------
# Forward wrapper: call kernel, reshape to NCHW, lazy scale broadcast
# ---------------------------------------------------------------------------
def gaussian_decoder_forward(z, w1, b1, w2, b2, logvar):
    """Returns (mean, scale) of td.Independent(td.Normal(mean, scale), 3)."""
    b = z.shape[0]

    bytes_accessed = (b * LATENT * 4              # z
                      + LATENT * HIDDEN * 2       # w1 (bf16)
                      + HIDDEN * 4                # b1
                      + HIDDEN * D_OUT * 2        # w2 (bf16) -- dominant
                      + D_OUT * 4                 # b2
                      + b * D_OUT * 4)            # mean out

    mean2d = pl.pallas_call(
        gaussian_decoder_kernel,
        out_shape=jax.ShapeDtypeStruct((b, D_OUT), jnp.float32),
        in_specs=[
            pl.BlockSpec(memory_space=pltpu.VMEM),   # z
            pl.BlockSpec(memory_space=pltpu.VMEM),   # w1 (bf16)
            pl.BlockSpec(memory_space=pltpu.VMEM),   # b1
            pl.BlockSpec(memory_space=pltpu.VMEM),   # w2 (bf16)
            pl.BlockSpec(memory_space=pltpu.VMEM),   # b2
        ],
        out_specs=pl.BlockSpec(memory_space=pltpu.VMEM),
        cost_estimate=pl.CostEstimate(
            flops=2 * b * (LATENT * HIDDEN + HIDDEN * D_OUT),
            transcendentals=0,
            bytes_accessed=bytes_accessed),
    )(z, w1, b1, w2, b2)

    # Glue: NCHW reshape (same memory order as torch .view(-1, C, H, W)).
    mean = mean2d.reshape(b, C, H, W)
    # exp(0.5*logvar).expand_as(mean): lazy broadcast, never materialized
    # by the kernel.
    scale = jnp.broadcast_to(jnp.exp(0.5 * logvar), mean.shape)
    return mean, scale


# ---------------------------------------------------------------------------
# Deterministic parameter initialization + smoke test
# ---------------------------------------------------------------------------
if __name__ == "__main__":
    key = jax.random.PRNGKey(0)
    k_z, k_w1, k_b1, k_w2, k_b2 = jax.random.split(key, 5)

    z = jax.random.normal(k_z, (B, LATENT), dtype=jnp.float32)
    w1 = jax.random.normal(k_w1, (LATENT, HIDDEN), dtype=jnp.float32) * 0.1
    b1 = jax.random.normal(k_b1, (1, HIDDEN), dtype=jnp.float32) * 0.01
    w2 = jax.random.normal(k_w2, (HIDDEN, D_OUT), dtype=jnp.float32) * 0.1
    b2 = jax.random.normal(k_b2, (1, D_OUT), dtype=jnp.float32) * 0.01
    logvar = jnp.float32(0.0)   # nn.Parameter(torch.tensor(0.0))

    params = prepare_params(w1, b1, w2, b2)   # bf16 weight cast, once
    fwd = jax.jit(gaussian_decoder_forward)
    mean, scale = fwd(z, *params, logvar)
    jax.block_until_ready((mean, scale))

    # Pure-JAX f32 reference; tolerance covers the bf16 weight/activation cast.
    h_ref = jnp.maximum(z @ w1 + b1, 0.0)
    mean_ref = (h_ref @ w2 + b2).reshape(B, C, H, W)
    scale_ref = jnp.broadcast_to(jnp.exp(0.5 * logvar), mean_ref.shape)

    assert mean.shape == (B, C, H, W) and scale.shape == (B, C, H, W)
    assert jnp.allclose(mean, mean_ref, rtol=2e-2, atol=2e-2), "mean mismatch"
    assert jnp.allclose(scale, scale_ref, atol=1e-6), "scale mismatch"

    print("KERNEL_OK")
</pallas_src>

<mosaic_0001>
module attributes {stable_mosaic.version = 11 : i64} {
  func.func @gaussian_decoder_kernel(%arg0: memref<2x8xf32, #tpu.memory_space<vmem>>, %arg1: memref<8x32xbf16, #tpu.memory_space<vmem>>, %arg2: memref<1x32xf32, #tpu.memory_space<vmem>>, %arg3: memref<32x1024xbf16, #tpu.memory_space<vmem>>, %arg4: memref<1x1024xf32, #tpu.memory_space<vmem>>, %arg5: memref<2x1024xf32, #tpu.memory_space<vmem>>) attributes {dimension_semantics = [], scalar_prefetch = 0 : i64, scratch_operands = 0 : i64, tpu.core_type = #tpu.core_type<tc>} {
    %c0 = arith.constant 0 : index
    %c0_0 = arith.constant 0 : index
    %0 = vector.load %arg0[%c0, %c0_0] : memref<2x8xf32, #tpu.memory_space<vmem>>, vector<2x8xf32>
    %1 = arith.truncf %0 : vector<2x8xf32> to vector<2x8xbf16>
    %c0_1 = arith.constant 0 : index
    %c0_2 = arith.constant 0 : index
    %2 = vector.load %arg1[%c0_1, %c0_2] : memref<8x32xbf16, #tpu.memory_space<vmem>>, vector<8x32xbf16>
    %cst = arith.constant dense<0.000000e+00> : vector<2x32xf32>
    %3 = tpu.matmul %1, %2, %cst {dimension_numbers = #tpu.dot_dimension_numbers<[1], [0], [0], [1], [0, 0, 1, 1], [], []>} : vector<2x8xbf16>, vector<8x32xbf16>, vector<2x32xf32> -> vector<2x32xf32>
    %c0_3 = arith.constant 0 : index
    %c0_4 = arith.constant 0 : index
    %4 = vector.load %arg2[%c0_3, %c0_4] : memref<1x32xf32, #tpu.memory_space<vmem>>, vector<1x32xf32>
    %5 = vector.broadcast %4 : vector<1x32xf32> to vector<2x32xf32>
    %6 = arith.addf %3, %5 : vector<2x32xf32>
    %cst_5 = arith.constant 0.000000e+00 : f32
    %7 = vector.broadcast %cst_5 : f32 to vector<2x32xf32>
    %8 = arith.maximumf %6, %7 : vector<2x32xf32>
    %9 = arith.truncf %8 : vector<2x32xf32> to vector<2x32xbf16>
    %c0_6 = arith.constant 0 : index
    %c0_7 = arith.constant 0 : index
    %10 = vector.load %arg3[%c0_6, %c0_7] : memref<32x1024xbf16, #tpu.memory_space<vmem>>, vector<32x1024xbf16>
    %cst_8 = arith.constant dense<0.000000e+00> : vector<2x1024xf32>
    %11 = tpu.matmul %9, %10, %cst_8 {dimension_numbers = #tpu.dot_dimension_numbers<[1], [0], [0], [1], [0, 0, 1, 1], [], []>} : vector<2x32xbf16>, vector<32x1024xbf16>, vector<2x1024xf32> -> vector<2x1024xf32>
    %c0_9 = arith.constant 0 : index
    %c0_10 = arith.constant 0 : index
    %12 = vector.load %arg4[%c0_9, %c0_10] : memref<1x1024xf32, #tpu.memory_space<vmem>>, vector<1x1024xf32>
    %13 = vector.broadcast %12 : vector<1x1024xf32> to vector<2x1024xf32>
    %14 = arith.addf %11, %13 : vector<2x1024xf32>
    %c0_11 = arith.constant 0 : index
    %c0_12 = arith.constant 0 : index
    %15 = vector.load %arg5[%c0_11, %c0_12] : memref<2x1024xf32, #tpu.memory_space<vmem>>, vector<2x1024xf32>
    tpu.vector_store %arg5[%c0_11, %c0_12], %14 {strides = array<i32>} : memref<2x1024xf32, #tpu.memory_space<vmem>>, vector<2x1024xf32>,
    return
  }
}

</mosaic_0001>

<llo_original>
// kernel: gaussian_decoder_forward.1
$region0: #{gaussian_decoder_forward.1}
  #allocation0 [shape = 'u32[]', space=smem, size = 0x4, offset = 0x4, fixed_abs, tag = 'smem constant byte address 0x4 - core index']
  #allocation1 [shape = 'u32[144,128]{1,0:T(1,128)}', space=vmem, size = 0x12000, scoped, tag = 'internal scratch']
  %s0 = inlined_call_operand.vmem [shape: f32[2,8], index: 0, kind: input, shape index: {}]
  %s1 = inlined_call_operand.vmem [shape: bf16[8,32], index: 1, kind: input, shape index: {}]
  %s2 = inlined_call_operand.vmem [shape: f32[1,32], index: 2, kind: input, shape index: {}]
  %s3 = inlined_call_operand.hbm [shape: bf16[32,1024], index: 3, kind: input, shape index: {}]
  %s4 = inlined_call_operand.vmem [shape: f32[1,1024], index: 4, kind: input, shape index: {}]
  %s5 = inlined_call_operand.vmem [shape: f32[2,1024], index: 5, kind: output, shape index: {}]
  %s6 = sld [smem:[#allocation0]]
  $region34: #{gaussian_decoder_forward.1} parent=0
    _
  %s8 = ssub.s32 1, %s6
  %s9 = scalar_select 0, %s8, %s6
  $region1: #{gaussian_decoder_forward.1} parent=0
    #allocation2 [shape = 'u8[65536]{0}', space=vmem, size = 0x10000, scoped, tag = 'input window, operand 3, single buffered']
    #allocation3 [shape = 's32[1]{0}', space=sflag, size = 0x4, scoped, tag = 'scoped memory for gaussian_decoder_forward.1']
    %10 = vsyncpa [#allocation3], 0
    // Predicated region
    $region2: #{gaussian_decoder_forward.1} parent=1 // pred_check
      _
    $region3: #{gaussian_decoder_forward.1} parent=1 // pred_check_branch
      %12 = sbr.rel (0) target = $region5
    $region4: #{gaussian_decoder_forward.1} parent=1 // pred_region
      _
    $region5: #{gaussian_decoder_forward.1} parent=1 // pred_fallthru
      _
    // Predicated region
    $region6: #{gaussian_decoder_forward.1} parent=1 // pred_check
      _
    $region7: #{gaussian_decoder_forward.1} parent=1 // pred_check_branch
      %14 = sbr.rel (0) target = $region9
    $region8: #{gaussian_decoder_forward.1} parent=1 // pred_region
      _
    $region9: #{gaussian_decoder_forward.1} parent=1 // pred_fallthru
      _
    // Predicated region
    $region10: #{gaussian_decoder_forward.1} parent=1 // pred_check
      _
    $region11: #{gaussian_decoder_forward.1} parent=1 // pred_check_branch
      %16 = sbr.rel (0) target = $region13
    $region12: #{gaussian_decoder_forward.1} parent=1 // pred_region
      _
    $region13: #{gaussian_decoder_forward.1} parent=1 // pred_fallthru
      _
    // Predicated region
    $region14: #{gaussian_decoder_forward.1} parent=1 // pred_check
      _
    $region15: #{gaussian_decoder_forward.1} parent=1 // pred_check_branch
      %18 = sbr.rel (0) target = $region17
    $region16: #{gaussian_decoder_forward.1} parent=1 // pred_region
      %s20 = ssub.s32 2048, 2048
      %21 = vsyncadd [#allocation3], %s20
      %s22 = sshll.u32 [#allocation2], 4
      %s23 = int_to_ptr.vmem [resolvable:$true] %s22
      %28 = dma.hbm_to_vmem [thread:$0]  %s3, 2048, %s23, [#allocation3], 512, 512, 32
    $region17: #{gaussian_decoder_forward.1} parent=1 // pred_fallthru
      _
    // Predicated region
    $region18: #{gaussian_decoder_forward.1} parent=1 // pred_check
      _
    $region19: #{gaussian_decoder_forward.1} parent=1 // pred_check_branch
      %30 = sbr.rel (0) target = $region21
    $region20: #{gaussian_decoder_forward.1} parent=1 // pred_region
      _
    $region21: #{gaussian_decoder_forward.1} parent=1 // pred_fallthru
      _
    // Predicated region
    $region22: #{gaussian_decoder_forward.1} parent=1 // pred_check
      _
    $region23: #{gaussian_decoder_forward.1} parent=1 // pred_check_branch
      %32 = sbr.rel (0) target = $region25
    $region24: #{gaussian_decoder_forward.1} parent=1 // pred_region
      %33 = dma.done [#allocation3], 2048
    $region25: #{gaussian_decoder_forward.1} parent=1 // pred_fallthru
      _
    %v35 = vld [vmem:[%s0] sm:$0x3]
    %v36 = vpack.c.bf16 %v35, %v35
    %v37 = vld [vmem:[%s1] sm:$0xf]
    %v38 = vld [vmem:[%s2] sm:$0x1]
    %v40 = vlaneseq
    %v41 = vshrl.u32 %v40, 7
    %v42 = vsub.s32 0, %v41
    %v43 = vrot.slane %v38, %v42
    %vm45 = vcmask 64512
    %v47 = vsel %vm45, %v36, 0
    %vm49 = vcmask 1043456
    %v51 = vsel %vm49, %v37, 0
    %53 = vmatprep.subr.bf16.mxu0 0
    %54 = vmatpush1.bf16.msra.mxu0 %v51
    %55 = vmatprep.subr.bf16.mxu0 0
    %56 = vmatpush1.bf16.msra.mxu0 0
    %57 = vmatprep.subr.bf16.mxu0 0
    %58 = vmatpush1.bf16.msra.mxu0 0
    %59 = vmatprep.subr.bf16.mxu0 0
    %60 = vmatpush1.bf16.msra.mxu0 0
    %61 = vmatprep.subr.bf16.mxu0 0
    %62 = vmatpush1.bf16.msra.mxu0 0
    %63 = vmatprep.subr.bf16.mxu0 0
    %64 = vmatpush1.bf16.msra.mxu0 0
    %65 = vmatprep.subr.bf16.mxu0 0
    %66 = vmatpush1.bf16.msra.mxu0 0
    %67 = vmatprep.subr.bf16.mxu0 0
    %68 = vmatpush1.bf16.msra.mxu0 0
    %69 = vmatprep.subr.bf16.mxu0 0
    %70 = vmatpush1.bf16.msra.mxu0 0
    %71 = vmatprep.subr.bf16.mxu0 0
    %72 = vmatpush1.bf16.msra.mxu0 0
    %73 = vmatprep.subr.bf16.mxu0 0
    %74 = vmatpush1.bf16.msra.mxu0 0
    %75 = vmatprep.subr.bf16.mxu0 0
    %76 = vmatpush1.bf16.msra.mxu0 0
    %77 = vmatprep.subr.bf16.mxu0 0
    %78 = vmatpush1.bf16.msra.mxu0 0
    %79 = vmatprep.subr.bf16.mxu0 0
    %80 = vmatpush1.bf16.msra.mxu0 0
    %81 = vmatprep.subr.bf16.mxu0 0
    %82 = vmatpush1.bf16.msra.mxu0 0
    %83 = vmatprep.subr.bf16.mxu0 0
    %84 = vmatpush1.bf16.msra.mxu0 0
    %85 = vmatprep.mubr.bf16.mxu0 0
    %86 = vmatmul.mubr.bf16.gmra.mrb[0].mxu0 %v47
    %v87 = vpop.f32.mrb[0].mxu0
    %v88 = vadd.f32 %v43, %v87
    %v89 = vpop.f32.mrb[0].mxu0
    %v90 = vpop.f32.mrb[0].mxu0
    %v91 = vpop.f32.mrb[0].mxu0
    %92 = vdwg.mxu0
    %v93 = vmax.f32 %v88, 0.0
    %v94 = vpack.c.bf16 %v93, %v93
    %v95 = vld [vmem:[#allocation2] sm:$0xff]
    %v96 = vld [vmem:[#allocation2 + $0x8] sm:$0xff]
    %v97 = vld [vmem:[#allocation2 + $0x10] sm:$0xff]
    %v98 = vld [vmem:[#allocation2 + $0x18] sm:$0xff]
    %v99 = vld [vmem:[#allocation2 + $0x20] sm:$0xff]
    %v100 = vld [vmem:[#allocation2 + $0x28] sm:$0xff]
    %v101 = vld [vmem:[#allocation2 + $0x30] sm:$0xff]
    %v102 = vld [vmem:[#allocation2 + $0x38] sm:$0xff]
    %v103 = vld [vmem:[#allocation2 + $0x40] sm:$0xff]
    %v104 = vld [vmem:[#allocation2 + $0x48] sm:$0xff]
    %v105 = vld [vmem:[#allocation2 + $0x50] sm:$0xff]
    %v106 = vld [vmem:[#allocation2 + $0x58] sm:$0xff]
    %v107 = vld [vmem:[#allocation2 + $0x60] sm:$0xff]
    %v108 = vld [vmem:[#allocation2 + $0x68] sm:$0xff]
    %v109 = vld [vmem:[#allocation2 + $0x70] sm:$0xff]
    %v110 = vld [vmem:[#allocation2 + $0x78] sm:$0xff]
    %v111 = vld [vmem:[%s4] sm:$0xff]
    %v113 = vlaneseq
    %v114 = vshrl.u32 %v113, 7
    %v115 = vsub.s32 0, %v114
    %v116 = vrot.slane %v111, %v115
    %v117 = vlaneseq
    %v118 = vshrl.u32 %v117, 7
    %v119 = vsub.s32 1, %v118
    %v120 = vrot.slane %v111, %v119
    %v121 = vlaneseq
    %v122 = vshrl.u32 %v121, 7
    %v123 = vsub.s32 2, %v122
    %v124 = vrot.slane %v111, %v123
    %v125 = vlaneseq
    %v126 = vshrl.u32 %v125, 7
    %v127 = vsub.s32 3, %v126
    %v128 = vrot.slane %v111, %v127
    %v129 = vlaneseq
    %v130 = vshrl.u32 %v129, 7
    %v131 = vsub.s32 4, %v130
    %v132 = vrot.slane %v111, %v131
    %v133 = vlaneseq
    %v134 = vshrl.u32 %v133, 7
    %v135 = vsub.s32 5, %v134
    %v136 = vrot.slane %v111, %v135
    %v137 = vlaneseq
    %v138 = vshrl.u32 %v137, 7
    %v139 = vsub.s32 6, %v138
    %v140 = vrot.slane %v111, %v139
    %v141 = vlaneseq
    %v142 = vshrl.u32 %v141, 7
    %v143 = vsub.s32 7, %v142
    %v144 = vrot.slane %v111, %v143
    %v169 = vunpack.c.l.b16 %v95
    %v170 = vunpack.c.h.b16 %v95
    %v171 = vunpack.c.l.b16 %v96
    %v172 = vunpack.c.h.b16 %v96
    %v173 = vunpack.c.l.b16 %v97
    %v174 = vunpack.c.h.b16 %v97
    %v175 = vunpack.c.l.b16 %v98
    %v176 = vunpack.c.h.b16 %v98
    %v177 = vunpack.c.l.b16 %v99
    %v178 = vunpack.c.h.b16 %v99
    %v179 = vunpack.c.l.b16 %v100
    %v180 = vunpack.c.h.b16 %v100
    %v181 = vunpack.c.l.b16 %v101
    %v182 = vunpack.c.h.b16 %v101
    %v183 = vunpack.c.l.b16 %v102
    %v184 = vunpack.c.h.b16 %v102
    %v185 = vunpack.c.l.b16 %v103
    %v186 = vunpack.c.h.b16 %v103
    %v187 = vunpack.c.l.b16 %v104
    %v188 = vunpack.c.h.b16 %v104
    %v189 = vunpack.c.l.b16 %v105
    %v190 = vunpack.c.h.b16 %v105
    %v191 = vunpack.c.l.b16 %v106
    %v192 = vunpack.c.h.b16 %v106
    %v193 = vunpack.c.l.b16 %v107
    %v194 = vunpack.c.h.b16 %v107
    %v195 = vunpack.c.l.b16 %v108
    %v196 = vunpack.c.h.b16 %v108
    %v197 = vunpack.c.l.b16 %v109
    %v198 = vunpack.c.h.b16 %v109
    %v199 = vunpack.c.l.b16 %v110
    %v200 = vunpack.c.h.b16 %v110
    %v201 = vpack.c.b16 %v177, %v169
    %v202 = vpack.c.b16 %v178, %v170
    %v203 = vpack.c.b16 %v179, %v171
    %v204 = vpack.c.b16 %v180, %v172
    %v205 = vpack.c.b16 %v181, %v173
    %v206 = vpack.c.b16 %v182, %v174
    %v207 = vpack.c.b16 %v183, %v175
    %v208 = vpack.c.b16 %v184, %v176
    %v209 = vpack.c.b16 %v193, %v185
    %v210 = vpack.c.b16 %v194, %v186
    %v211 = vpack.c.b16 %v195, %v187
    %v212 = vpack.c.b16 %v196, %v188
    %v213 = vpack.c.b16 %v197, %v189
    %v214 = vpack.c.b16 %v198, %v190
    %v215 = vpack.c.b16 %v199, %v191
    %v216 = vpack.c.b16 %v200, %v192
    %vm233 = vcmask 261120
    %v235 = vsel %vm233, %v94, 0
    %237 = vmatprep.subr.bf16.mxu0 %v202
    %238 = vmatpush1.bf16.msra.mxu0 %v201
    %239 = vmatprep.subr.bf16.mxu0 %v210
    %240 = vmatpush1.bf16.msra.mxu0 %v209
    %241 = vmatprep.subr.bf16.mxu0 0
    %242 = vmatpush1.bf16.msra.mxu0 0
    %243 = vmatprep.subr.bf16.mxu0 0
    %244 = vmatpush1.bf16.msra.mxu0 0
    %245 = vmatprep.subr.bf16.mxu0 0
    %246 = vmatpush1.bf16.msra.mxu0 0
    %247 = vmatprep.subr.bf16.mxu0 0
    %248 = vmatpush1.bf16.msra.mxu0 0
    %249 = vmatprep.subr.bf16.mxu0 0
    %250 = vmatpush1.bf16.msra.mxu0 0
    %251 = vmatprep.subr.bf16.mxu0 0
    %252 = vmatpush1.bf16.msra.mxu0 0
    %253 = vmatprep.subr.bf16.mxu0 0
    %254 = vmatpush1.bf16.msra.mxu0 0
    %255 = vmatprep.subr.bf16.mxu0 0
    %256 = vmatpush1.bf16.msra.mxu0 0
    %257 = vmatprep.subr.bf16.mxu0 0
    %258 = vmatpush1.bf16.msra.mxu0 0
    %259 = vmatprep.subr.bf16.mxu0 0
    %260 = vmatpush1.bf16.msra.mxu0 0
    %261 = vmatprep.subr.bf16.mxu0 0
    %262 = vmatpush1.bf16.msra.mxu0 0
    %263 = vmatprep.subr.bf16.mxu0 0
    %264 = vmatpush1.bf16.msra.mxu0 0
    %265 = vmatprep.subr.bf16.mxu0 0
    %266 = vmatpush1.bf16.msra.mxu0 0
    %267 = vmatprep.subr.bf16.mxu0 0
    %268 = vmatpush1.bf16.msra.mxu0 0
    %269 = vmatprep.mubr.bf16.mxu0 0
    %270 = vmatmul.mubr.bf16.gmra.mrb[0].mxu0 %v235
    %v271 = vpop.f32.mrb[0].mxu0
    %v272 = vadd.f32 %v116, %v271
    %v273 = vpop.f32.mrb[0].mxu0
    %v274 = vadd.f32 %v120, %v273
    %v275 = vpop.f32.mrb[0].mxu0
    %v276 = vpop.f32.mrb[0].mxu0
    %277 = vdwg.mxu0
    %278 = vmatprep.subr.bf16.mxu0 %v204
    %279 = vmatpush1.bf16.msra.mxu0 %v203
    %280 = vmatprep.subr.bf16.mxu0 %v212
    %281 = vmatpush1.bf16.msra.mxu0 %v211
    %282 = vmatprep.subr.bf16.mxu0 0
    %283 = vmatpush1.bf16.msra.mxu0 0
    %284 = vmatprep.subr.bf16.mxu0 0
    %285 = vmatpush1.bf16.msra.mxu0 0
    %286 = vmatprep.subr.bf16.mxu0 0
    %287 = vmatpush1.bf16.msra.mxu0 0
    %288 = vmatprep.subr.bf16.mxu0 0
    %289 = vmatpush1.bf16.msra.mxu0 0
    %290 = vmatprep.subr.bf16.mxu0 0
    %291 = vmatpush1.bf16.msra.mxu0 0
    %292 = vmatprep.subr.bf16.mxu0 0
    %293 = vmatpush1.bf16.msra.mxu0 0
    %294 = vmatprep.subr.bf16.mxu0 0
    %295 = vmatpush1.bf16.msra.mxu0 0
    %296 = vmatprep.subr.bf16.mxu0 0
    %297 = vmatpush1.bf16.msra.mxu0 0
    %298 = vmatprep.subr.bf16.mxu0 0
    %299 = vmatpush1.bf16.msra.mxu0 0
    %300 = vmatprep.subr.bf16.mxu0 0
    %301 = vmatpush1.bf16.msra.mxu0 0
    %302 = vmatprep.subr.bf16.mxu0 0
    %303 = vmatpush1.bf16.msra.mxu0 0
    %304 = vmatprep.subr.bf16.mxu0 0
    %305 = vmatpush1.bf16.msra.mxu0 0
    %306 = vmatprep.subr.bf16.mxu0 0
    %307 = vmatpush1.bf16.msra.mxu0 0
    %308 = vmatprep.subr.bf16.mxu0 0
    %309 = vmatpush1.bf16.msra.mxu0 0
    %310 = vmatprep.mubr.bf16.mxu0 0
    %311 = vmatmul.mubr.bf16.gmra.mrb[0].mxu0 %v235
    %v312 = vpop.f32.mrb[0].mxu0
    %v313 = vadd.f32 %v124, %v312
    %v314 = vpop.f32.mrb[0].mxu0
    %v315 = vadd.f32 %v128, %v314
    %v316 = vpop.f32.mrb[0].mxu0
    %v317 = vpop.f32.mrb[0].mxu0
    %318 = vdwg.mxu0
    %319 = vmatprep.subr.bf16.mxu0 %v206
    %320 = vmatpush1.bf16.msra.mxu0 %v205
    %321 = vmatprep.subr.bf16.mxu0 %v214
    %322 = vmatpush1.bf16.msra.mxu0 %v213
    %323 = vmatprep.subr.bf16.mxu0 0
    %324 = vmatpush1.bf16.msra.mxu0 0
    %325 = vmatprep.subr.bf16.mxu0 0
    %326 = vmatpush1.bf16.msra.mxu0 0
    %327 = vmatprep.subr.bf16.mxu0 0
    %328 = vmatpush1.bf16.msra.mxu0 0
    %329 = vmatprep.subr.bf16.mxu0 0
    %330 = vmatpush1.bf16.msra.mxu0 0
    %331 = vmatprep.subr.bf16.mxu0 0
    %332 = vmatpush1.bf16.msra.mxu0 0
    %333 = vmatprep.subr.bf16.mxu0 0
    %334 = vmatpush1.bf16.msra.mxu0 0
    %335 = vmatprep.subr.bf16.mxu0 0
    %336 = vmatpush1.bf16.msra.mxu0 0
    %337 = vmatprep.subr.bf16.mxu0 0
    %338 = vmatpush1.bf16.msra.mxu0 0
    %339 = vmatprep.subr.bf16.mxu0 0
    %340 = vmatpush1.bf16.msra.mxu0 0
    %341 = vmatprep.subr.bf16.mxu0 0
    %342 = vmatpush1.bf16.msra.mxu0 0
    %343 = vmatprep.subr.bf16.mxu0 0
    %344 = vmatpush1.bf16.msra.mxu0 0
    %345 = vmatprep.subr.bf16.mxu0 0
    %346 = vmatpush1.bf16.msra.mxu0 0
    %347 = vmatprep.subr.bf16.mxu0 0
    %348 = vmatpush1.bf16.msra.mxu0 0
    %349 = vmatprep.subr.bf16.mxu0 0
    %350 = vmatpush1.bf16.msra.mxu0 0
    %351 = vmatprep.mubr.bf16.mxu0 0
    %352 = vmatmul.mubr.bf16.gmra.mrb[0].mxu0 %v235
    %v353 = vpop.f32.mrb[0].mxu0
    %v354 = vadd.f32 %v132, %v353
    %v355 = vpop.f32.mrb[0].mxu0
    %v356 = vadd.f32 %v136, %v355
    %v357 = vpop.f32.mrb[0].mxu0
    %v358 = vpop.f32.mrb[0].mxu0
    %359 = vdwg.mxu0
    %360 = vmatprep.subr.bf16.mxu0 %v208
    %361 = vmatpush1.bf16.msra.mxu0 %v207
    %362 = vmatprep.subr.bf16.mxu0 %v216
    %363 = vmatpush1.bf16.msra.mxu0 %v215
    %364 = vmatprep.subr.bf16.mxu0 0
    %365 = vmatpush1.bf16.msra.mxu0 0
    %366 = vmatprep.subr.bf16.mxu0 0
    %367 = vmatpush1.bf16.msra.mxu0 0
    %368 = vmatprep.subr.bf16.mxu0 0
    %369 = vmatpush1.bf16.msra.mxu0 0
    %370 = vmatprep.subr.bf16.mxu0 0
    %371 = vmatpush1.bf16.msra.mxu0 0
    %372 = vmatprep.subr.bf16.mxu0 0
    %373 = vmatpush1.bf16.msra.mxu0 0
    %374 = vmatprep.subr.bf16.mxu0 0
    %375 = vmatpush1.bf16.msra.mxu0 0
    %376 = vmatprep.subr.bf16.mxu0 0
    %377 = vmatpush1.bf16.msra.mxu0 0
    %378 = vmatprep.subr.bf16.mxu0 0
    %379 = vmatpush1.bf16.msra.mxu0 0
    %380 = vmatprep.subr.bf16.mxu0 0
    %381 = vmatpush1.bf16.msra.mxu0 0
    %382 = vmatprep.subr.bf16.mxu0 0
    %383 = vmatpush1.bf16.msra.mxu0 0
    %384 = vmatprep.subr.bf16.mxu0 0
    %385 = vmatpush1.bf16.msra.mxu0 0
    %386 = vmatprep.subr.bf16.mxu0 0
    %387 = vmatpush1.bf16.msra.mxu0 0
    %388 = vmatprep.subr.bf16.mxu0 0
    %389 = vmatpush1.bf16.msra.mxu0 0
    %390 = vmatprep.subr.bf16.mxu0 0
    %391 = vmatpush1.bf16.msra.mxu0 0
    %392 = vmatprep.mubr.bf16.mxu0 0
    %393 = vmatmul.mubr.bf16.gmra.mrb[0].mxu0 %v235
    %v394 = vpop.f32.mrb[0].mxu0
    %v395 = vadd.f32 %v140, %v394
    %v396 = vpop.f32.mrb[0].mxu0
    %v397 = vadd.f32 %v144, %v396
    %v398 = vpop.f32.mrb[0].mxu0
    %v399 = vpop.f32.mrb[0].mxu0
    %400 = vdwg.mxu0
    %v409 = vcombine.low %v272, %v274
    %v410 = vcombine.low %v313, %v315
    %v412 = vunpack.c.l.s4 1983009808
    %v413 = vunpack.c.0.s8 %v412
    %v414 = vlaneseq
    %v415 = vshrl.u32 %v414, 7
    %v416 = vsub.s32 %v413, %v415
    %v417 = vrot.slane %v409, %v416
    %v419 = vunpack.c.l.s4 1983009808
    %v420 = vunpack.c.0.s8 %v419
    %v421 = vlaneseq
    %v422 = vshrl.u32 %v421, 7
    %v423 = vsub.s32 %v420, %v422
    %v424 = vrot.slane %v410, %v423
    %v425 = vcombine.low %v417, %v424
    %v426 = vcombine.low %v354, %v356
    %v427 = vcombine.low %v395, %v397
    %v429 = vunpack.c.l.s4 1983009808
    %v430 = vunpack.c.0.s8 %v429
    %v431 = vlaneseq
    %v432 = vshrl.u32 %v431, 7
    %v433 = vsub.s32 %v430, %v432
    %v434 = vrot.slane %v426, %v433
    %v436 = vunpack.c.l.s4 1983009808
    %v437 = vunpack.c.0.s8 %v436
    %v438 = vlaneseq
    %v439 = vshrl.u32 %v438, 7
    %v440 = vsub.s32 %v437, %v439
    %v441 = vrot.slane %v427, %v440
    %v442 = vcombine.low %v434, %v441
    %445 = vst [vmem:[%s5] sm:$0xff] %v425
    %446 = vst [vmem:[%s5 + $0x8] sm:$0xff] %v442
    // Predicated region
    $region26: #{gaussian_decoder_forward.1} parent=1 // pred_check
      _
    $region27: #{gaussian_decoder_forward.1} parent=1 // pred_check_branch
      %448 = sbr.rel (0) target = $region29
    $region28: #{gaussian_decoder_forward.1} parent=1 // pred_region
      _
    $region29: #{gaussian_decoder_forward.1} parent=1 // pred_fallthru
      _
    // Predicated region
    $region30: #{gaussian_decoder_forward.1} parent=1 // pred_check
      _
    $region31: #{gaussian_decoder_forward.1} parent=1 // pred_check_branch
      %450 = sbr.rel (0) target = $region33
    $region32: #{gaussian_decoder_forward.1} parent=1 // pred_region
      _
    $region33: #{gaussian_decoder_forward.1} parent=1 // pred_fallthru
      _
    %451 = vsyncpa [#allocation3], 1

</llo_original>
